<compile_context>
chip_gen: v6e
topology: v6e:2x2x1
jax: 0.10.0
libtpu: 0.0.40
codegen_flags: <defaults>
</compile_context>

<pallas_src>
import jax
import jax.numpy as jnp
from jax.experimental import pallas as pl
from jax.experimental.pallas import tpu as pltpu


# ----------------------------- config ------------------------------------
class Conf:
    D_kernel_size = 7
    D_n_layers = 4
    D_chan = 32
    input_crop_size = 16


def build_k_lst(conf):
    k_size = conf.D_kernel_size
    k_lst = [1] * (conf.D_n_layers - 1)
    cur = 0
    while k_size > 1:
        k_lst[cur] = k_size if k_size < 7 else 7
        cur += 1
        k_size -= 6
    return k_lst


def _round_up(a, b):
    return ((a + b - 1) // b) * b


# ------------------------ parameter setup (glue) --------------------------
def spectral_normalize(w):
    # nn.utils.spectral_norm at inference: divide the weight by the largest
    # singular value of w.reshape(out, -1).  We run a converged power
    # iteration (PyTorch keeps a persistent random `u` and does 1 iter/forward).
    w_mat = w.reshape(w.shape[0], -1)
    u = jnp.ones((w_mat.shape[0],), jnp.float32) / jnp.sqrt(float(w_mat.shape[0]))
    v = jnp.zeros((w_mat.shape[1],), jnp.float32)
    for _ in range(30):
        v = w_mat.T @ u
        v = v / (jnp.linalg.norm(v) + 1e-12)
        u = w_mat @ v
        u = u / (jnp.linalg.norm(u) + 1e-12)
    sigma = u @ (w_mat @ v)
    return w / sigma


def init_params(conf, key):
    k_lst = build_k_lst(conf)
    # TODO(synk): feature-block convs with kernel>1 (D_kernel_size>7) not implemented.
    assert all(k == 1 for k in k_lst[1:]), "only D_kernel_size<=7 supported"
    C, Cin, k0 = conf.D_chan, 3, k_lst[0]
    Lf = conf.D_n_layers - 2
    keys = jax.random.split(key, 6)

    # first conv, PyTorch layout (Cout, Cin, KH, KW), spectral-normalized
    w1 = spectral_normalize(0.05 * jax.random.normal(keys[0], (C, Cin, k0, k0), jnp.float32))
    b1 = 0.05 * jax.random.normal(keys[1], (C,), jnp.float32)

    # BatchNorm2d eval-mode with default init (gamma=1, beta=0, rm=0, rv=1, eps=1e-5)
    # -> per-channel affine, folded exactly into the 1x1 conv weights/biases.
    eps = 1e-5
    bn_scale = 1.0 / jnp.sqrt(1.0 + eps)
    bn_bias = 0.0

    wfT, bfT = [], []
    for l in range(Lf):
        wl = spectral_normalize(
            0.05 * jax.random.normal(jax.random.fold_in(keys[2], l), (C, C, 1, 1), jnp.float32))
        bl = 0.05 * jax.random.normal(jax.random.fold_in(keys[3], l), (C,), jnp.float32)
        w_mc = wl.reshape(C, C).T * bn_scale          # (Cin, Cout), BN folded
        b_mc = bl * bn_scale + bn_bias                # (Cout,),     BN folded
        wfT.append(w_mc.T)                            # (Cout, Cin) for transposed layout
        bfT.append(b_mc.reshape(C, 1))

    w3 = spectral_normalize(0.05 * jax.random.normal(keys[4], (1, C, 1, 1), jnp.float32))
    b3 = 0.05 * jax.random.normal(keys[5], (1,), jnp.float32)

    K = k0 * k0 * Cin                                 # 147
    Kpad = _round_up(K, 128)                          # 256: unmasked lanes / clean MXU K
    # im2col order (kh, kw, cin) -> (K, Cout), zero-pad K, then transpose to (Cout, Kpad)
    w1_mat = jnp.transpose(w1, (2, 3, 1, 0)).reshape(K, C)
    w1_mat = jnp.pad(w1_mat, ((0, Kpad - K), (0, 0)))

    return dict(
        k0=k0, K=K, Kpad=Kpad, C=C, Lf=Lf,
        w1T=w1_mat.T,                                 # (C, Kpad)
        b1=b1.reshape(C, 1),                          # (C, 1)
        wfT=jnp.stack(wfT, 0),                        # (Lf, C, C)  (BN folded)
        bfT=jnp.stack(bfT, 0),                        # (Lf, C, 1)  (BN folded)
        w3T=w3.reshape(1, C),                         # (1, C)
        b3=b3.reshape(1, 1),                          # (1, 1)
    )


# ------------------------------ kernel ------------------------------------
def _disc_kernel(xcT_ref, w1T_ref, b1_ref, wfT_ref, bfT_ref, w3T_ref, b3_ref, out_ref):
    # first spectral-norm conv as an im2col matmul, transposed layout:
    #   h (C, TM) = w1T (C, Kpad) @ xcT (Kpad, TM)  + bias (C, 1)
    h = jnp.dot(w1T_ref[...], xcT_ref[...], preferred_element_type=jnp.float32) + b1_ref[...]
    # feature block: [1x1 conv (+ folded eval BN) + ReLU] * Lf
    Lf = wfT_ref.shape[0]
    for l in range(Lf):                               # static Python loop (Lf known at trace time)
        h = jnp.dot(wfT_ref[l], h, preferred_element_type=jnp.float32) + bfT_ref[l]
        h = jnp.maximum(h, 0.0)
    # final 1x1 conv + sigmoid, lane-dense (1, TM) output
    o = jnp.dot(w3T_ref[...], h, preferred_element_type=jnp.float32) + b3_ref[...]
    out_ref[...] = jax.nn.sigmoid(o)


def _full_spec(shape):
    n = len(shape)
    return pl.BlockSpec(shape, lambda i, n=n: (0,) * n)


# ------------------------------ wrapper ------------------------------------
def discriminator_forward(x_nchw, params):
    x = jnp.transpose(x_nchw.astype(jnp.float32), (0, 2, 3, 1))  # NCHW -> NHWC
    N, H, W, Cin = x.shape
    k0, K, Kpad, C, Lf = params["k0"], params["K"], params["Kpad"], params["C"], params["Lf"]
    Ho, Wo = H - k0 + 1, W - k0 + 1
    M = N * Ho * Wo

    # im2col (layout glue): (M, K), patch order = (kh, kw, cin)
    # TODO(synk): if profiling shows this XLA gather dominating, build the patch
    # slab inside the kernel from the tiny NHWC image instead.
    cols = [x[:, i:i + Ho, j:j + Wo, :] for i in range(k0) for j in range(k0)]
    xc = jnp.stack(cols, axis=3).reshape(M, K)

    # Transposed, padded slab: lanes carry spatial positions (lane-dense),
    # sublanes carry the im2col K dim.  Zero padding keeps the matmul exact.
    if M <= 1024:
        TM = _round_up(M, 128)        # single block: no grid overhead at small M
    else:
        TM = 512                      # tile M; pipelined, "parallel" across cores
    Mpad = _round_up(M, TM)
    xcT = jnp.pad(xc.T, ((0, Kpad - K), (0, Mpad - M)))   # (Kpad, Mpad)

    flops = 2 * Mpad * (Kpad * C + Lf * C * C + C)
    bytes_accessed = 4 * (Kpad * Mpad + C * Kpad + Lf * C * C + C * (Lf + 1) + C + 1 + Mpad)

    out = pl.pallas_call(
        _disc_kernel,
        out_shape=jax.ShapeDtypeStruct((1, Mpad), jnp.float32),
        grid=(Mpad // TM,),
        in_specs=[
            pl.BlockSpec((Kpad, TM), lambda i: (0, i)),   # xcT tile (resident K, tiled M)
            _full_spec(params["w1T"].shape),
            _full_spec(params["b1"].shape),
            _full_spec(params["wfT"].shape),
            _full_spec(params["bfT"].shape),
            _full_spec(params["w3T"].shape),
            _full_spec(params["b3"].shape),
        ],
        out_specs=pl.BlockSpec((1, TM), lambda i: (0, i)),  # lane-dense output tile
        compiler_params=pltpu.CompilerParams(dimension_semantics=("parallel",)),
        cost_estimate=pl.CostEstimate(
            flops=int(flops), transcendentals=int(Mpad), bytes_accessed=int(bytes_accessed)),
    )(xcT, params["w1T"], params["b1"], params["wfT"], params["bfT"],
      params["w3T"], params["b3"])

    # drop padding, back to PyTorch NCHW
    out = out[0, :M].reshape(N, Ho, Wo, 1)
    return jnp.transpose(out, (0, 3, 1, 2))


# --------------------------- pure-JAX reference -----------------------------
def reference_forward(x_nchw, params):
    # Independent (M, C)-layout, un-padded computation of the same folded module.
    x = jnp.transpose(x_nchw.astype(jnp.float32), (0, 2, 3, 1))
    N, H, W, Cin = x.shape
    k0, K = params["k0"], params["K"]
    Ho, Wo = H - k0 + 1, W - k0 + 1
    cols = [x[:, i:i + Ho, j:j + Wo, :] for i in range(k0) for j in range(k0)]
    xc = jnp.stack(cols, axis=3).reshape(N * Ho * Wo, K)
    h = xc @ params["w1T"][:, :K].T + params["b1"].T
    for l in range(params["wfT"].shape[0]):
        h = jnp.maximum(h @ params["wfT"][l].T + params["bfT"][l].T, 0.0)
    o = jax.nn.sigmoid(h @ params["w3T"].T + params["b3"])
    return jnp.transpose(o.reshape(N, Ho, Wo, 1), (0, 3, 1, 2))


if __name__ == "__main__":
    conf = Conf()
    key = jax.random.PRNGKey(0)
    k_in, k_par = jax.random.split(key)
    params = init_params(conf, k_par)

    x = jax.random.normal(
        k_in, (2, 3, conf.input_crop_size, conf.input_crop_size), jnp.float32)

    out = jax.block_until_ready(discriminator_forward(x, params))
    ref = jax.block_until_ready(reference_forward(x, params))

    expect_hw = conf.input_crop_size - (conf.D_kernel_size - 1)  # 16 - 6 = 10
    assert out.shape == (2, 1, expect_hw, expect_hw), out.shape
    assert jnp.all(jnp.isfinite(out))
    assert jnp.allclose(out, ref, atol=1e-5, rtol=1e-5)

    print("KERNEL_OK")
</pallas_src>

<mosaic_0001>
module attributes {stable_mosaic.version = 11 : i64} {
  func.func @_disc_kernel(%arg0: i32, %arg1: memref<256x256xf32, #tpu.memory_space<vmem>>, %arg2: memref<32x256xf32, #tpu.memory_space<vmem>>, %arg3: memref<32x1xf32, #tpu.memory_space<vmem>>, %arg4: memref<2x32x32xf32, #tpu.memory_space<vmem>>, %arg5: memref<2x32x1xf32, #tpu.memory_space<vmem>>, %arg6: memref<1x32xf32, #tpu.memory_space<vmem>>, %arg7: memref<1x1xf32, #tpu.memory_space<vmem>>, %arg8: memref<1x256xf32, #tpu.memory_space<vmem>>) attributes {dimension_semantics = [#tpu.dimension_semantics<parallel>], iteration_bounds = array<i64: 1>, scalar_prefetch = 0 : i64, scratch_operands = 0 : i64, tpu.core_type = #tpu.core_type<tc>, window_params = [{transform_indices = @transform_0, window_bounds = array<i64: 256, 256>}, {pipeline_mode = #tpu.pipeline_mode<synchronous>, transform_indices = @transform_1, window_bounds = array<i64: 32, 256>}, {pipeline_mode = #tpu.pipeline_mode<synchronous>, transform_indices = @transform_2, window_bounds = array<i64: 32, 1>}, {pipeline_mode = #tpu.pipeline_mode<synchronous>, transform_indices = @transform_3, window_bounds = array<i64: 2, 32, 32>}, {pipeline_mode = #tpu.pipeline_mode<synchronous>, transform_indices = @transform_4, window_bounds = array<i64: 2, 32, 1>}, {pipeline_mode = #tpu.pipeline_mode<synchronous>, transform_indices = @transform_5, window_bounds = array<i64: 1, 32>}, {pipeline_mode = #tpu.pipeline_mode<synchronous>, transform_indices = @transform_6, window_bounds = array<i64: 1, 1>}, {transform_indices = @transform_7, window_bounds = array<i64: 1, 256>}]} {
    %c0 = arith.constant 0 : index
    %c0_0 = arith.constant 0 : index
    %0 = vector.load %arg2[%c0, %c0_0] : memref<32x256xf32, #tpu.memory_space<vmem>>, vector<32x256xf32>
    %c0_1 = arith.constant 0 : index
    %c0_2 = arith.constant 0 : index
    %1 = vector.load %arg1[%c0_1, %c0_2] : memref<256x256xf32, #tpu.memory_space<vmem>>, vector<256x256xf32>
    %cst = arith.constant dense<0.000000e+00> : vector<32x256xf32>
    %2 = tpu.matmul %0, %1, %cst {dimension_numbers = #tpu.dot_dimension_numbers<[1], [0], [0], [1], [0, 0, 1, 1], [], []>} : vector<32x256xf32>, vector<256x256xf32>, vector<32x256xf32> -> vector<32x256xf32>
    %c0_3 = arith.constant 0 : index
    %c0_4 = arith.constant 0 : index
    %3 = vector.load %arg3[%c0_3, %c0_4] : memref<32x1xf32, #tpu.memory_space<vmem>>, vector<32x1xf32>
    %4 = vector.broadcast %3 : vector<32x1xf32> to vector<32x256xf32>
    %5 = arith.addf %2, %4 : vector<32x256xf32>
    %c0_5 = arith.constant 0 : index
    %c0_6 = arith.constant 0 : index
    %c0_7 = arith.constant 0 : index
    %6 = vector.load %arg4[%c0_5, %c0_6, %c0_7] : memref<2x32x32xf32, #tpu.memory_space<vmem>>, vector<1x32x32xf32>
    %7 = vector.shape_cast %6 : vector<1x32x32xf32> to vector<32x32xf32>
    %cst_8 = arith.constant dense<0.000000e+00> : vector<32x256xf32>
    %8 = tpu.matmul %7, %5, %cst_8 {dimension_numbers = #tpu.dot_dimension_numbers<[1], [0], [0], [1], [0, 0, 1, 1], [], []>} : vector<32x32xf32>, vector<32x256xf32>, vector<32x256xf32> -> vector<32x256xf32>
    %c0_9 = arith.constant 0 : index
    %c0_10 = arith.constant 0 : index
    %c0_11 = arith.constant 0 : index
    %9 = vector.load %arg5[%c0_9, %c0_10, %c0_11] : memref<2x32x1xf32, #tpu.memory_space<vmem>>, vector<1x32x1xf32>
    %10 = vector.shape_cast %9 : vector<1x32x1xf32> to vector<32x1xf32>
    %11 = vector.broadcast %10 : vector<32x1xf32> to vector<32x256xf32>
    %12 = arith.addf %8, %11 : vector<32x256xf32>
    %cst_12 = arith.constant 0.000000e+00 : f32
    %13 = vector.broadcast %cst_12 : f32 to vector<32x256xf32>
    %14 = arith.maximumf %12, %13 : vector<32x256xf32>
    %c1 = arith.constant 1 : index
    %c0_13 = arith.constant 0 : index
    %c0_14 = arith.constant 0 : index
    %15 = vector.load %arg4[%c1, %c0_13, %c0_14] : memref<2x32x32xf32, #tpu.memory_space<vmem>>, vector<1x32x32xf32>
    %16 = vector.shape_cast %15 : vector<1x32x32xf32> to vector<32x32xf32>
    %cst_15 = arith.constant dense<0.000000e+00> : vector<32x256xf32>
    %17 = tpu.matmul %16, %14, %cst_15 {dimension_numbers = #tpu.dot_dimension_numbers<[1], [0], [0], [1], [0, 0, 1, 1], [], []>} : vector<32x32xf32>, vector<32x256xf32>, vector<32x256xf32> -> vector<32x256xf32>
    %c1_16 = arith.constant 1 : index
    %c0_17 = arith.constant 0 : index
    %c0_18 = arith.constant 0 : index
    %18 = vector.load %arg5[%c1_16, %c0_17, %c0_18] : memref<2x32x1xf32, #tpu.memory_space<vmem>>, vector<1x32x1xf32>
    %19 = vector.shape_cast %18 : vector<1x32x1xf32> to vector<32x1xf32>
    %20 = vector.broadcast %19 : vector<32x1xf32> to vector<32x256xf32>
    %21 = arith.addf %17, %20 : vector<32x256xf32>
    %cst_19 = arith.constant 0.000000e+00 : f32
    %22 = vector.broadcast %cst_19 : f32 to vector<32x256xf32>
    %23 = arith.maximumf %21, %22 : vector<32x256xf32>
    %c0_20 = arith.constant 0 : index
    %c0_21 = arith.constant 0 : index
    %24 = vector.load %arg6[%c0_20, %c0_21] : memref<1x32xf32, #tpu.memory_space<vmem>>, vector<1x32xf32>
    %cst_22 = arith.constant dense<0.000000e+00> : vector<1x256xf32>
    %25 = tpu.matmul %24, %23, %cst_22 {dimension_numbers = #tpu.dot_dimension_numbers<[1], [0], [0], [1], [0, 0, 1, 1], [], []>} : vector<1x32xf32>, vector<32x256xf32>, vector<1x256xf32> -> vector<1x256xf32>
    %c0_23 = arith.constant 0 : index
    %c0_24 = arith.constant 0 : index
    %26 = vector.load %arg7[%c0_23, %c0_24] : memref<1x1xf32, #tpu.memory_space<vmem>>, vector<1x1xf32>
    %27 = vector.broadcast %26 : vector<1x1xf32> to vector<1x256xf32>
    %28 = arith.addf %25, %27 : vector<1x256xf32>
    %29 = arith.negf %28 : vector<1x256xf32>
    %30 = math.exp %29 : vector<1x256xf32>
    %cst_25 = arith.constant 1.000000e+00 : f32
    %31 = vector.broadcast %cst_25 : f32 to vector<1x256xf32>
    %32 = arith.addf %31, %30 : vector<1x256xf32>
    %33 = arith.divf %31, %32 : vector<1x256xf32>
    %c0_26 = arith.constant 0 : index
    %c0_27 = arith.constant 0 : index
    %34 = vector.load %arg8[%c0_26, %c0_27] : memref<1x256xf32, #tpu.memory_space<vmem>>, vector<1x256xf32>
    tpu.vector_store %arg8[%c0_26, %c0_27], %33 {strides = array<i32>} : memref<1x256xf32, #tpu.memory_space<vmem>>, vector<1x256xf32>,
    return
  }
  func.func @transform_0(%arg0: i32) -> (i32, i32) {
    %c0_i32 = arith.constant 0 : i32
    %c0_i32_0 = arith.constant 0 : i32
    return %c0_i32, %arg0 : i32, i32
  }
  func.func @transform_1(%arg0: i32) -> (i32, i32) {
    %c0_i32 = arith.constant 0 : i32
    %c0_i32_0 = arith.constant 0 : i32
    %c0_i32_1 = arith.constant 0 : i32
    return %c0_i32, %c0_i32_0 : i32, i32
  }
  func.func @transform_2(%arg0: i32) -> (i32, i32) {
    %c0_i32 = arith.constant 0 : i32
    %c0_i32_0 = arith.constant 0 : i32
    %c0_i32_1 = arith.constant 0 : i32
    return %c0_i32, %c0_i32_0 : i32, i32
  }
  func.func @transform_3(%arg0: i32) -> (i32, i32, i32) {
    %c0_i32 = arith.constant 0 : i32
    %c0_i32_0 = arith.constant 0 : i32
    %c0_i32_1 = arith.constant 0 : i32
    %c0_i32_2 = arith.constant 0 : i32
    return %c0_i32, %c0_i32_0, %c0_i32_1 : i32, i32, i32
  }
  func.func @transform_4(%arg0: i32) -> (i32, i32, i32) {
    %c0_i32 = arith.constant 0 : i32
    %c0_i32_0 = arith.constant 0 : i32
    %c0_i32_1 = arith.constant 0 : i32
    %c0_i32_2 = arith.constant 0 : i32
    return %c0_i32, %c0_i32_0, %c0_i32_1 : i32, i32, i32
  }
  func.func @transform_5(%arg0: i32) -> (i32, i32) {
    %c0_i32 = arith.constant 0 : i32
    %c0_i32_0 = arith.constant 0 : i32
    %c0_i32_1 = arith.constant 0 : i32
    return %c0_i32, %c0_i32_0 : i32, i32
  }
  func.func @transform_6(%arg0: i32) -> (i32, i32) {
    %c0_i32 = arith.constant 0 : i32
    %c0_i32_0 = arith.constant 0 : i32
    %c0_i32_1 = arith.constant 0 : i32
    return %c0_i32, %c0_i32_0 : i32, i32
  }
  func.func @transform_7(%arg0: i32) -> (i32, i32) {
    %c0_i32 = arith.constant 0 : i32
    %c0_i32_0 = arith.constant 0 : i32
    return %c0_i32, %arg0 : i32, i32
  }
}

</mosaic_0001>

<llo_original>
// kernel: tpu_custom_call.1
$region0: #{tpu_custom_call.1}
  #allocation0 [shape = 'u32[]', space=smem, size = 0x4, offset = 0x4, fixed_abs, tag = 'smem constant byte address 0x4 - core index']
  #allocation1 [shape = 'u32[144,128]{1,0:T(1,128)}', space=vmem, size = 0x12000, scoped, tag = 'internal scratch']
  #allocation2 [shape = 'f32[1,1]{1,0:T(1,128)S(1)}', space=vmem, size = 0x200, scoped, tag = 'scoped memory for tpu_custom_call.1']
  %s0 = inlined_call_operand.hbm [shape: f32[256,256], index: 0, kind: input, shape index: {}]
  %s1 = inlined_call_operand.vmem [shape: f32[32,256], index: 1, kind: input, shape index: {}]
  %s2 = inlined_call_operand.vmem [shape: f32[32,1], index: 2, kind: input, shape index: {}]
  %s3 = inlined_call_operand.hbm [shape: f32[2,32,32], index: 3, kind: input, shape index: {}]
  %s4 = inlined_call_operand.vmem [shape: f32[2,32,1], index: 4, kind: input, shape index: {}]
  %s5 = inlined_call_operand.vmem [shape: f32[1,32], index: 5, kind: input, shape index: {}]
  %s6 = inlined_call_operand.<no memory space> [shape: f32[1,1], index: 6, kind: input, shape index: {}]
  %s7 = inlined_call_operand.hbm [shape: f32[1,256], index: 7, kind: output, shape index: {}]
  %s8 = sld [smem:[#allocation0]]
  $region46: #{tpu_custom_call.1} parent=0
    _
  %s10 = ssub.s32 1, %s8
  %s11 = scalar_select 0, %s10, %s8
  %v12 = vstv %s6
  %13 = vst [vmem:[#allocation2] sm:$0x1] %v12
  $region1: #{tpu_custom_call.1} parent=0
    #allocation3 [shape = 'u8[262144]{0}', space=vmem, size = 0x40000, scoped, tag = 'input window, operand 0, single buffered']
    #allocation4 [shape = 's32[1]{0}', space=sflag, size = 0x4, scoped, tag = 'scoped memory for tpu_custom_call.1']
    #allocation5 [shape = 's32[1]{0}', space=sflag, size = 0x4, scoped, tag = 'scoped memory for tpu_custom_call.1']
    #allocation6 [shape = 'u8[32768]{0}', space=vmem, size = 0x8000, scoped, tag = 'input window, operand 3, single buffered']
    #allocation7 [shape = 's32[1]{0}', space=sflag, size = 0x4, scoped, tag = 'scoped memory for tpu_custom_call.1']
    #allocation8 [shape = 'u8[1024]{0}', space=vmem, size = 0x400, scoped, tag = 'output window, operand 0, single buffered']
    %14 = vsyncpa [#allocation4], 0
    %15 = vsyncpa [#allocation7], 0
    %16 = vsyncpa [#allocation5], 0
    // Predicated region
    $region2: #{tpu_custom_call.1} parent=1 // pred_check
      _
    $region3: #{tpu_custom_call.1} parent=1 // pred_check_branch
      %18 = sbr.rel (0) target = $region5
    $region4: #{tpu_custom_call.1} parent=1 // pred_region
      %s20 = ssub.s32 8192, 8192
      %21 = vsyncadd [#allocation4], %s20
      %s22 = sshll.u32 [#allocation3], 4
      %s23 = int_to_ptr.vmem [resolvable:$true] %s22
      %28 = dma.hbm_to_vmem [thread:$0]  %s0, 8192, %s23, [#allocation4], 256, 256, 16
    $region5: #{tpu_custom_call.1} parent=1 // pred_fallthru
      _
    // Predicated region
    $region6: #{tpu_custom_call.1} parent=1 // pred_check
      _
    $region7: #{tpu_custom_call.1} parent=1 // pred_check_branch
      %30 = sbr.rel (0) target = $region9
    $region8: #{tpu_custom_call.1} parent=1 // pred_region
      _
    $region9: #{tpu_custom_call.1} parent=1 // pred_fallthru
      _
    // Predicated region
    $region10: #{tpu_custom_call.1} parent=1 // pred_check
      _
    $region11: #{tpu_custom_call.1} parent=1 // pred_check_branch
      %32 = sbr.rel (0) target = $region13
    $region12: #{tpu_custom_call.1} parent=1 // pred_region
      _
    $region13: #{tpu_custom_call.1} parent=1 // pred_fallthru
      _
    // Predicated region
    $region14: #{tpu_custom_call.1} parent=1 // pred_check
      _
    $region15: #{tpu_custom_call.1} parent=1 // pred_check_branch
      %34 = sbr.rel (0) target = $region17
    $region16: #{tpu_custom_call.1} parent=1 // pred_region
      %s36 = ssub.s32 1024, 1024
      %37 = vsyncadd [#allocation7], %s36
      %s38 = sshll.u32 [#allocation6], 4
      %s39 = int_to_ptr.vmem [resolvable:$true] %s38
      %44 = dma.hbm_to_vmem [thread:$0]  %s3, 1024, %s39, [#allocation7], 128, 128, 8
    $region17: #{tpu_custom_call.1} parent=1 // pred_fallthru
      _
    // Predicated region
    $region18: #{tpu_custom_call.1} parent=1 // pred_check
      _
    $region19: #{tpu_custom_call.1} parent=1 // pred_check_branch
      %46 = sbr.rel (0) target = $region21
    $region20: #{tpu_custom_call.1} parent=1 // pred_region
      _
    $region21: #{tpu_custom_call.1} parent=1 // pred_fallthru
      _
    // Predicated region
    $region22: #{tpu_custom_call.1} parent=1 // pred_check
      _
    $region23: #{tpu_custom_call.1} parent=1 // pred_check_branch
      %48 = sbr.rel (0) target = $region25
    $region24: #{tpu_custom_call.1} parent=1 // pred_region
      _
    $region25: #{tpu_custom_call.1} parent=1 // pred_fallthru
      _
    // Predicated region
    $region26: #{tpu_custom_call.1} parent=1 // pred_check
      _
    $region27: #{tpu_custom_call.1} parent=1 // pred_check_branch
      %50 = sbr.rel (0) target = $region29
    $region28: #{tpu_custom_call.1} parent=1 // pred_region
      _
    $region29: #{tpu_custom_call.1} parent=1 // pred_fallthru
      _
    // Predicated region
    $region30: #{tpu_custom_call.1} parent=1 // pred_check
      _
    $region31: #{tpu_custom_call.1} parent=1 // pred_check_branch
      %52 = sbr.rel (0) target = $region33
    $region32: #{tpu_custom_call.1} parent=1 // pred_region
      %53 = dma.done [#allocation4], 8192
    $region33: #{tpu_custom_call.1} parent=1 // pred_fallthru
      _
    // Predicated region
    $region34: #{tpu_custom_call.1} parent=1 // pred_check
      _
    $region35: #{tpu_custom_call.1} parent=1 // pred_check_branch
      %55 = sbr.rel (0) target = $region37
    $region36: #{tpu_custom_call.1} parent=1 // pred_region
      %56 = dma.done [#allocation7], 1024
    $region37: #{tpu_custom_call.1} parent=1 // pred_fallthru
      _
    %v57 = vld [vmem:[%s1] sm:$0xff]
    %v58 = vld [vmem:[%s1 + $0x8] sm:$0xff]
    %v59 = vld [vmem:[%s1 + $0x10] sm:$0xff]
    %v60 = vld [vmem:[%s1 + $0x18] sm:$0xff]
    %v61 = vld [vmem:[%s1 + $0x20] sm:$0xff]
    %v62 = vld [vmem:[%s1 + $0x28] sm:$0xff]
    %v63 = vld [vmem:[%s1 + $0x30] sm:$0xff]
    %v64 = vld [vmem:[%s1 + $0x38] sm:$0xff]
    %v65 = vld [vmem:[#allocation3] sm:$0xff]
    %v66 = vld [vmem:[#allocation3 + $0x8] sm:$0xff]
    %v67 = vld [vmem:[#allocation3 + $0x10] sm:$0xff]
    %v68 = vld [vmem:[#allocation3 + $0x18] sm:$0xff]
    %v69 = vld [vmem:[#allocation3 + $0x20] sm:$0xff]
    %v70 = vld [vmem:[#allocation3 + $0x28] sm:$0xff]
    %v71 = vld [vmem:[#allocation3 + $0x30] sm:$0xff]
    %v72 = vld [vmem:[#allocation3 + $0x38] sm:$0xff]
    %v73 = vld [vmem:[#allocation3 + $0x40] sm:$0xff]
    %v74 = vld [vmem:[#allocation3 + $0x48] sm:$0xff]
    %v75 = vld [vmem:[#allocation3 + $0x50] sm:$0xff]
    %v76 = vld [vmem:[#allocation3 + $0x58] sm:$0xff]
    %v77 = vld [vmem:[#allocation3 + $0x60] sm:$0xff]
    %v78 = vld [vmem:[#allocation3 + $0x68] sm:$0xff]
    %v79 = vld [vmem:[#allocation3 + $0x70] sm:$0xff]
    %v80 = vld [vmem:[#allocation3 + $0x78] sm:$0xff]
    %v81 = vld [vmem:[#allocation3 + $0x80] sm:$0xff]
    %v82 = vld [vmem:[#allocation3 + $0x88] sm:$0xff]
    %v83 = vld [vmem:[#allocation3 + $0x90] sm:$0xff]
    %v84 = vld [vmem:[#allocation3 + $0x98] sm:$0xff]
    %v85 = vld [vmem:[#allocation3 + $0xa0] sm:$0xff]
    %v86 = vld [vmem:[#allocation3 + $0xa8] sm:$0xff]
    %v87 = vld [vmem:[#allocation3 + $0xb0] sm:$0xff]
    %v88 = vld [vmem:[#allocation3 + $0xb8] sm:$0xff]
    %v89 = vld [vmem:[#allocation3 + $0xc0] sm:$0xff]
    %v90 = vld [vmem:[#allocation3 + $0xc8] sm:$0xff]
    %v91 = vld [vmem:[#allocation3 + $0xd0] sm:$0xff]
    %v92 = vld [vmem:[#allocation3 + $0xd8] sm:$0xff]
    %v93 = vld [vmem:[#allocation3 + $0xe0] sm:$0xff]
    %v94 = vld [vmem:[#allocation3 + $0xe8] sm:$0xff]
    %v95 = vld [vmem:[#allocation3 + $0xf0] sm:$0xff]
    %v96 = vld [vmem:[#allocation3 + $0xf8] sm:$0xff]
    %v97 = vld [vmem:[#allocation3 + $0x100] sm:$0xff]
    %v98 = vld [vmem:[#allocation3 + $0x108] sm:$0xff]
    %v99 = vld [vmem:[#allocation3 + $0x110] sm:$0xff]
    %v100 = vld [vmem:[#allocation3 + $0x118] sm:$0xff]
    %v101 = vld [vmem:[#allocation3 + $0x120] sm:$0xff]
    %v102 = vld [vmem:[#allocation3 + $0x128] sm:$0xff]
    %v103 = vld [vmem:[#allocation3 + $0x130] sm:$0xff]
    %v104 = vld [vmem:[#allocation3 + $0x138] sm:$0xff]
    %v105 = vld [vmem:[#allocation3 + $0x140] sm:$0xff]
    %v106 = vld [vmem:[#allocation3 + $0x148] sm:$0xff]
    %v107 = vld [vmem:[#allocation3 + $0x150] sm:$0xff]
    %v108 = vld [vmem:[#allocation3 + $0x158] sm:$0xff]
    %v109 = vld [vmem:[#allocation3 + $0x160] sm:$0xff]
    %v110 = vld [vmem:[#allocation3 + $0x168] sm:$0xff]
    %v111 = vld [vmem:[#allocation3 + $0x170] sm:$0xff]
    %v112 = vld [vmem:[#allocation3 + $0x178] sm:$0xff]
    %v113 = vld [vmem:[#allocation3 + $0x180] sm:$0xff]
    %v114 = vld [vmem:[#allocation3 + $0x188] sm:$0xff]
    %v115 = vld [vmem:[#allocation3 + $0x190] sm:$0xff]
    %v116 = vld [vmem:[#allocation3 + $0x198] sm:$0xff]
    %v117 = vld [vmem:[#allocation3 + $0x1a0] sm:$0xff]
    %v118 = vld [vmem:[#allocation3 + $0x1a8] sm:$0xff]
    %v119 = vld [vmem:[#allocation3 + $0x1b0] sm:$0xff]
    %v120 = vld [vmem:[#allocation3 + $0x1b8] sm:$0xff]
    %v121 = vld [vmem:[#allocation3 + $0x1c0] sm:$0xff]
    %v122 = vld [vmem:[#allocation3 + $0x1c8] sm:$0xff]
    %v123 = vld [vmem:[#allocation3 + $0x1d0] sm:$0xff]
    %v124 = vld [vmem:[#allocation3 + $0x1d8] sm:$0xff]
    %v125 = vld [vmem:[#allocation3 + $0x1e0] sm:$0xff]
    %v126 = vld [vmem:[#allocation3 + $0x1e8] sm:$0xff]
    %v127 = vld [vmem:[#allocation3 + $0x1f0] sm:$0xff]
    %v128 = vld [vmem:[#allocation3 + $0x1f8] sm:$0xff]
    %v129 = vld [vmem:[%s2] sm:$0xff]
    %v130 = vld [vmem:[%s2 + $0x8] sm:$0xff]
    %v131 = vld [vmem:[%s2 + $0x10] sm:$0xff]
    %v132 = vld [vmem:[%s2 + $0x18] sm:$0xff]
    %134 = vset.pattern.permute.xlu0 0
    %135 = vperm.xlu0 %134, %v129
    %v136 = vpop.permute.xlu0 %135
    %139 = vset.pattern.permute.xlu0 0
    %140 = vperm.xlu0 %139, %v130
    %v141 = vpop.permute.xlu0 %140
    %144 = vset.pattern.permute.xlu0 0
    %145 = vperm.xlu0 %144, %v131
    %v146 = vpop.permute.xlu0 %145
    %149 = vset.pattern.permute.xlu0 0
    %150 = vperm.xlu0 %149, %v132
    %v151 = vpop.permute.xlu0 %150
    %153 = vmatprep.subr.mxu0 %v96
    %154 = vmatpush1.msra.mxu0 %v95
    %155 = vmatprep.subr.mxu0 %v94
    %156 = vmatpush1.msra.mxu0 %v93
    %157 = vmatprep.subr.mxu0 %v92
    %158 = vmatpush1.msra.mxu0 %v91
    %159 = vmatprep.subr.mxu0 %v90
    %160 = vmatpush1.msra.mxu0 %v89
    %161 = vmatprep.subr.mxu0 %v88
    %162 = vmatpush1.msra.mxu0 %v87
    %163 = vmatprep.subr.mxu0 %v86
    %164 = vmatpush1.msra.mxu0 %v85
    %165 = vmatprep.subr.mxu0 %v84
    %166 = vmatpush1.msra.mxu0 %v83
    %167 = vmatprep.subr.mxu0 %v82
    %168 = vmatpush1.msra.mxu0 %v81
    %169 = vmatprep.subr.mxu0 %v80
    %170 = vmatpush1.msra.mxu0 %v79
    %171 = vmatprep.subr.mxu0 %v78
    %172 = vmatpush1.msra.mxu0 %v77
    %173 = vmatprep.subr.mxu0 %v76
    %174 = vmatpush1.msra.mxu0 %v75
    %175 = vmatprep.subr.mxu0 %v74
    %176 = vmatpush1.msra.mxu0 %v73
    %177 = vmatprep.subr.mxu0 %v72
    %178 = vmatpush1.msra.mxu0 %v71
    %179 = vmatprep.subr.mxu0 %v70
    %180 = vmatpush1.msra.mxu0 %v69
    %181 = vmatprep.subr.mxu0 %v68
    %182 = vmatpush1.msra.mxu0 %v67
    %183 = vmatprep.subr.mxu0 %v66
    %184 = vmatpush1.msra.mxu0 %v65
    %185 = vmatprep.subr.mxu0 %v128
    %186 = vmatpush2.msra.mxu0 %v127
    %187 = vmatprep.subr.mxu0 %v126
    %188 = vmatpush2.msra.mxu0 %v125
    %189 = vmatprep.subr.mxu0 %v124
    %190 = vmatpush2.msra.mxu0 %v123
    %191 = vmatprep.subr.mxu0 %v122
    %192 = vmatpush2.msra.mxu0 %v121
    %193 = vmatprep.subr.mxu0 %v120
    %194 = vmatpush2.msra.mxu0 %v119
    %195 = vmatprep.subr.mxu0 %v118
    %196 = vmatpush2.msra.mxu0 %v117
    %197 = vmatprep.subr.mxu0 %v116
    %198 = vmatpush2.msra.mxu0 %v115
    %199 = vmatprep.subr.mxu0 %v114
    %200 = vmatpush2.msra.mxu0 %v113
    %201 = vmatprep.subr.mxu0 %v112
    %202 = vmatpush2.msra.mxu0 %v111
    %203 = vmatprep.subr.mxu0 %v110
    %204 = vmatpush2.msra.mxu0 %v109
    %205 = vmatprep.subr.mxu0 %v108
    %206 = vmatpush2.msra.mxu0 %v107
    %207 = vmatprep.subr.mxu0 %v106
    %208 = vmatpush2.msra.mxu0 %v105
    %209 = vmatprep.subr.mxu0 %v104
    %210 = vmatpush2.msra.mxu0 %v103
    %211 = vmatprep.subr.mxu0 %v102
    %212 = vmatpush2.msra.mxu0 %v101
    %213 = vmatprep.subr.mxu0 %v100
    %214 = vmatpush2.msra.mxu0 %v99
    %215 = vmatprep.subr.mxu0 %v98
    %216 = vmatpush2.msra.mxu0 %v97
    %217 = vmatprep.mubr.f32.mxu0 %v58
    %218 = vmatmul.mubr.f32.gmra.mxu0 %v57
    %v219 = vpop.f32.mrf.mxu0
    %v220 = vadd.f32 %v136, %v219
    %v221 = vpop.f32.mrf.mxu0
    %v222 = vadd.f32 %v136, %v221
    %223 = vmatprep.mubr.f32.mxu0 %v60
    %224 = vmatmul.mubr.f32.gmra.mxu0 %v59
    %v225 = vpop.f32.mrf.mxu0
    %v226 = vadd.f32 %v141, %v225
    %v227 = vpop.f32.mrf.mxu0
    %v228 = vadd.f32 %v141, %v227
    %229 = vmatprep.mubr.f32.mxu0 %v62
    %230 = vmatmul.mubr.f32.gmra.mxu0 %v61
    %v231 = vpop.f32.mrf.mxu0
    %v232 = vadd.f32 %v146, %v231
    %v233 = vpop.f32.mrf.mxu0
    %v234 = vadd.f32 %v146, %v233
    %235 = vmatprep.mubr.f32.mxu0 %v64
    %236 = vmatmul.mubr.f32.gmra.mxu0 %v63
    %v237 = vpop.f32.mrf.mxu0
    %v238 = vadd.f32 %v151, %v237
    %v239 = vpop.f32.mrf.mxu0
    %v240 = vadd.f32 %v151, %v239
    %241 = vdwg.mxu0
    %v242 = vld [vmem:[#allocation6] sm:$0xff]
    %v243 = vld [vmem:[#allocation6 + $0x8] sm:$0xff]
    %v244 = vld [vmem:[#allocation6 + $0x10] sm:$0xff]
    %v245 = vld [vmem:[#allocation6 + $0x18] sm:$0xff]
    %v246 = vld [vmem:[%s4] sm:$0xff]
    %v247 = vld [vmem:[%s4 + $0x8] sm:$0xff]
    %v248 = vld [vmem:[%s4 + $0x10] sm:$0xff]
    %v249 = vld [vmem:[%s4 + $0x18] sm:$0xff]
    %251 = vset.pattern.permute.xlu0 0
    %252 = vperm.xlu0 %251, %v246
    %v253 = vpop.permute.xlu0 %252
    %256 = vset.pattern.permute.xlu0 0
    %257 = vperm.xlu0 %256, %v247
    %v258 = vpop.permute.xlu0 %257
    %261 = vset.pattern.permute.xlu0 0
    %262 = vperm.xlu0 %261, %v248
    %v263 = vpop.permute.xlu0 %262
    %266 = vset.pattern.permute.xlu0 0
    %267 = vperm.xlu0 %266, %v249
    %v268 = vpop.permute.xlu0 %267
    %vm270 = vcmask 261120
    %v272 = vsel %vm270, %v242, 0
    %v275 = vsel %vm270, %v243, 0
    %v278 = vsel %vm270, %v244, 0
    %v281 = vsel %vm270, %v245, 0
    %283 = vmatprep.subr.mxu0 0.0
    %284 = vmatpush1.msra.mxu0 0.0
    %285 = vmatprep.subr.mxu0 0.0
    %286 = vmatpush1.msra.mxu0 0.0
    %287 = vmatprep.subr.mxu0 0.0
    %288 = vmatpush1.msra.mxu0 0.0
    %289 = vmatprep.subr.mxu0 0.0
    %290 = vmatpush1.msra.mxu0 0.0
    %291 = vmatprep.subr.mxu0 0.0
    %292 = vmatpush1.msra.mxu0 0.0
    %293 = vmatprep.subr.mxu0 0.0
    %294 = vmatpush1.msra.mxu0 0.0
    %295 = vmatprep.subr.mxu0 0.0
    %296 = vmatpush1.msra.mxu0 0.0
    %297 = vmatprep.subr.mxu0 0.0
    %298 = vmatpush1.msra.mxu0 0.0
    %299 = vmatprep.subr.mxu0 0.0
    %300 = vmatpush1.msra.mxu0 0.0
    %301 = vmatprep.subr.mxu0 0.0
    %302 = vmatpush1.msra.mxu0 0.0
    %303 = vmatprep.subr.mxu0 0.0
    %304 = vmatpush1.msra.mxu0 0.0
    %305 = vmatprep.subr.mxu0 0.0
    %306 = vmatpush1.msra.mxu0 0.0
    %307 = vmatprep.subr.mxu0 %v240
    %308 = vmatpush1.msra.mxu0 %v238
    %309 = vmatprep.subr.mxu0 %v234
    %310 = vmatpush1.msra.mxu0 %v232
    %311 = vmatprep.subr.mxu0 %v228
    %312 = vmatpush1.msra.mxu0 %v226
    %313 = vmatprep.subr.mxu0 %v222
    %314 = vmatpush1.msra.mxu0 %v220
    %315 = vmatprep.subr.mxu0 0.0
    %316 = vmatpush2.msra.mxu0 0.0
    %317 = vmatprep.subr.mxu0 0.0
    %318 = vmatpush2.msra.mxu0 0.0
    %319 = vmatprep.subr.mxu0 0.0
    %320 = vmatpush2.msra.mxu0 0.0
    %321 = vmatprep.subr.mxu0 0.0
    %322 = vmatpush2.msra.mxu0 0.0
    %323 = vmatprep.subr.mxu0 0.0
    %324 = vmatpush2.msra.mxu0 0.0
    %325 = vmatprep.subr.mxu0 0.0
    %326 = vmatpush2.msra.mxu0 0.0
    %327 = vmatprep.subr.mxu0 0.0
    %328 = vmatpush2.msra.mxu0 0.0
    %329 = vmatprep.subr.mxu0 0.0
    %330 = vmatpush2.msra.mxu0 0.0
    %331 = vmatprep.subr.mxu0 0.0
    %332 = vmatpush2.msra.mxu0 0.0
    %333 = vmatprep.subr.mxu0 0.0
    %334 = vmatpush2.msra.mxu0 0.0
    %335 = vmatprep.subr.mxu0 0.0
    %336 = vmatpush2.msra.mxu0 0.0
    %337 = vmatprep.subr.mxu0 0.0
    %338 = vmatpush2.msra.mxu0 0.0
    %339 = vmatprep.subr.mxu0 0.0
    %340 = vmatpush2.msra.mxu0 0.0
    %341 = vmatprep.subr.mxu0 0.0
    %342 = vmatpush2.msra.mxu0 0.0
    %343 = vmatprep.subr.mxu0 0.0
    %344 = vmatpush2.msra.mxu0 0.0
    %345 = vmatprep.subr.mxu0 0.0
    %346 = vmatpush2.msra.mxu0 0.0
    %347 = vmatprep.mubr.f32.mxu0 0.0
    %348 = vmatmul.mubr.f32.gmra.mxu0 %v272
    %v349 = vpop.f32.mrf.mxu0
    %v350 = vadd.f32 %v253, %v349
    %v351 = vpop.f32.mrf.mxu0
    %v352 = vadd.f32 %v253, %v351
    %353 = vmatprep.mubr.f32.mxu0 0.0
    %354 = vmatmul.mubr.f32.gmra.mxu0 %v275
    %v355 = vpop.f32.mrf.mxu0
    %v356 = vadd.f32 %v258, %v355
    %v357 = vpop.f32.mrf.mxu0
    %v358 = vadd.f32 %v258, %v357
    %359 = vmatprep.mubr.f32.mxu0 0.0
    %360 = vmatmul.mubr.f32.gmra.mxu0 %v278
    %v361 = vpop.f32.mrf.mxu0
    %v362 = vadd.f32 %v263, %v361
    %v363 = vpop.f32.mrf.mxu0
    %v364 = vadd.f32 %v263, %v363
    %365 = vmatprep.mubr.f32.mxu0 0.0
    %366 = vmatmul.mubr.f32.gmra.mxu0 %v281
    %v367 = vpop.f32.mrf.mxu0
    %v368 = vadd.f32 %v268, %v367
    %v369 = vpop.f32.mrf.mxu0
    %v370 = vadd.f32 %v268, %v369
    %371 = vdwg.mxu0
    %v372 = vmax.f32 %v350, 0.0
    %v373 = vmax.f32 %v352, 0.0
    %v374 = vmax.f32 %v356, 0.0
    %v375 = vmax.f32 %v358, 0.0
    %v376 = vmax.f32 %v362, 0.0
    %v377 = vmax.f32 %v364, 0.0
    %v378 = vmax.f32 %v368, 0.0
    %v379 = vmax.f32 %v370, 0.0
    %s380 = scalar_lea.vmem [#allocation6], 32
    %v381 = vld [vmem:[%s380] sm:$0xff]
    %v382 = vld [vmem:[%s380 + $0x8] sm:$0xff]
    %v383 = vld [vmem:[%s380 + $0x10] sm:$0xff]
    %v384 = vld [vmem:[%s380 + $0x18] sm:$0xff]
    %s385 = scalar_lea.vmem %s4, 32
    %v386 = vld [vmem:[%s385] sm:$0xff]
    %v387 = vld [vmem:[%s385 + $0x8] sm:$0xff]
    %v388 = vld [vmem:[%s385 + $0x10] sm:$0xff]
    %v389 = vld [vmem:[%s385 + $0x18] sm:$0xff]
    %391 = vset.pattern.permute.xlu0 0
    %392 = vperm.xlu0 %391, %v386
    %v393 = vpop.permute.xlu0 %392
    %396 = vset.pattern.permute.xlu0 0
    %397 = vperm.xlu0 %396, %v387
    %v398 = vpop.permute.xlu0 %397
    %401 = vset.pattern.permute.xlu0 0
    %402 = vperm.xlu0 %401, %v388
    %v403 = vpop.permute.xlu0 %402
    %406 = vset.pattern.permute.xlu0 0
    %407 = vperm.xlu0 %406, %v389
    %v408 = vpop.permute.xlu0 %407
    %v411 = vsel %vm270, %v381, 0
    %v414 = vsel %vm270, %v382, 0
    %v417 = vsel %vm270, %v383, 0
    %v420 = vsel %vm270, %v384, 0
    %422 = vmatprep.subr.mxu0 0.0
    %423 = vmatpush1.msra.mxu0 0.0
    %424 = vmatprep.subr.mxu0 0.0
    %425 = vmatpush1.msra.mxu0 0.0
    %426 = vmatprep.subr.mxu0 0.0
    %427 = vmatpush1.msra.mxu0 0.0
    %428 = vmatprep.subr.mxu0 0.0
    %429 = vmatpush1.msra.mxu0 0.0
    %430 = vmatprep.subr.mxu0 0.0
    %431 = vmatpush1.msra.mxu0 0.0
    %432 = vmatprep.subr.mxu0 0.0
    %433 = vmatpush1.msra.mxu0 0.0
    %434 = vmatprep.subr.mxu0 0.0
    %435 = vmatpush1.msra.mxu0 0.0
    %436 = vmatprep.subr.mxu0 0.0
    %437 = vmatpush1.msra.mxu0 0.0
    %438 = vmatprep.subr.mxu0 0.0
    %439 = vmatpush1.msra.mxu0 0.0
    %440 = vmatprep.subr.mxu0 0.0
    %441 = vmatpush1.msra.mxu0 0.0
    %442 = vmatprep.subr.mxu0 0.0
    %443 = vmatpush1.msra.mxu0 0.0
    %444 = vmatprep.subr.mxu0 0.0
    %445 = vmatpush1.msra.mxu0 0.0
    %446 = vmatprep.subr.mxu0 %v379
    %447 = vmatpush1.msra.mxu0 %v378
    %448 = vmatprep.subr.mxu0 %v377
    %449 = vmatpush1.msra.mxu0 %v376
    %450 = vmatprep.subr.mxu0 %v375
    %451 = vmatpush1.msra.mxu0 %v374
    %452 = vmatprep.subr.mxu0 %v373
    %453 = vmatpush1.msra.mxu0 %v372
    %454 = vmatprep.subr.mxu0 0.0
    %455 = vmatpush2.msra.mxu0 0.0
    %456 = vmatprep.subr.mxu0 0.0
    %457 = vmatpush2.msra.mxu0 0.0
    %458 = vmatprep.subr.mxu0 0.0
    %459 = vmatpush2.msra.mxu0 0.0
    %460 = vmatprep.subr.mxu0 0.0
    %461 = vmatpush2.msra.mxu0 0.0
    %462 = vmatprep.subr.mxu0 0.0
    %463 = vmatpush2.msra.mxu0 0.0
    %464 = vmatprep.subr.mxu0 0.0
    %465 = vmatpush2.msra.mxu0 0.0
    %466 = vmatprep.subr.mxu0 0.0
    %467 = vmatpush2.msra.mxu0 0.0
    %468 = vmatprep.subr.mxu0 0.0
    %469 = vmatpush2.msra.mxu0 0.0
    %470 = vmatprep.subr.mxu0 0.0
    %471 = vmatpush2.msra.mxu0 0.0
    %472 = vmatprep.subr.mxu0 0.0
    %473 = vmatpush2.msra.mxu0 0.0
    %474 = vmatprep.subr.mxu0 0.0
    %475 = vmatpush2.msra.mxu0 0.0
    %476 = vmatprep.subr.mxu0 0.0
    %477 = vmatpush2.msra.mxu0 0.0
    %478 = vmatprep.subr.mxu0 0.0
    %479 = vmatpush2.msra.mxu0 0.0
    %480 = vmatprep.subr.mxu0 0.0
    %481 = vmatpush2.msra.mxu0 0.0
    %482 = vmatprep.subr.mxu0 0.0
    %483 = vmatpush2.msra.mxu0 0.0
    %484 = vmatprep.subr.mxu0 0.0
    %485 = vmatpush2.msra.mxu0 0.0
    %486 = vmatprep.mubr.f32.mxu0 0.0
    %487 = vmatmul.mubr.f32.gmra.mxu0 %v411
    %v488 = vpop.f32.mrf.mxu0
    %v489 = vadd.f32 %v393, %v488
    %v490 = vpop.f32.mrf.mxu0
    %v491 = vadd.f32 %v393, %v490
    %492 = vmatprep.mubr.f32.mxu0 0.0
    %493 = vmatmul.mubr.f32.gmra.mxu0 %v414
    %v494 = vpop.f32.mrf.mxu0
    %v495 = vadd.f32 %v398, %v494
    %v496 = vpop.f32.mrf.mxu0
    %v497 = vadd.f32 %v398, %v496
    %498 = vmatprep.mubr.f32.mxu0 0.0
    %499 = vmatmul.mubr.f32.gmra.mxu0 %v417
    %v500 = vpop.f32.mrf.mxu0
    %v501 = vadd.f32 %v403, %v500
    %v502 = vpop.f32.mrf.mxu0
    %v503 = vadd.f32 %v403, %v502
    %504 = vmatprep.mubr.f32.mxu0 0.0
    %505 = vmatmul.mubr.f32.gmra.mxu0 %v420
    %v506 = vpop.f32.mrf.mxu0
    %v507 = vadd.f32 %v408, %v506
    %v508 = vpop.f32.mrf.mxu0
    %v509 = vadd.f32 %v408, %v508
    %510 = vdwg.mxu0
    %v511 = vmax.f32 %v489, 0.0
    %v512 = vmax.f32 %v491, 0.0
    %v513 = vmax.f32 %v495, 0.0
    %v514 = vmax.f32 %v497, 0.0
    %v515 = vmax.f32 %v501, 0.0
    %v516 = vmax.f32 %v503, 0.0
    %v517 = vmax.f32 %v507, 0.0
    %v518 = vmax.f32 %v509, 0.0
    %v519 = vld [vmem:[%s5] sm:$0x1]
    %v520 = vld [vmem:[#allocation2] sm:$0x1]
    %522 = vset.pattern.permute.xlu0 0
    %523 = vperm.xlu0 %522, %v520
    %v524 = vpop.permute.xlu0 %523
    %v526 = vlaneseq
    %v527 = vshrl.u32 %v526, 7
    %v528 = vsub.s32 0, %v527
    %v529 = vrot.slane %v524, %v528
    %v531 = vsel %vm270, %v519, 0
    %533 = vmatprep.subr.mxu0 0.0
    %534 = vmatpush1.msra.mxu0 0.0
    %535 = vmatprep.subr.mxu0 0.0
    %536 = vmatpush1.msra.mxu0 0.0
    %537 = vmatprep.subr.mxu0 0.0
    %538 = vmatpush1.msra.mxu0 0.0
    %539 = vmatprep.subr.mxu0 0.0
    %540 = vmatpush1.msra.mxu0 0.0
    %541 = vmatprep.subr.mxu0 0.0
    %542 = vmatpush1.msra.mxu0 0.0
    %543 = vmatprep.subr.mxu0 0.0
    %544 = vmatpush1.msra.mxu0 0.0
    %545 = vmatprep.subr.mxu0 0.0
    %546 = vmatpush1.msra.mxu0 0.0
    %547 = vmatprep.subr.mxu0 0.0
    %548 = vmatpush1.msra.mxu0 0.0
    %549 = vmatprep.subr.mxu0 0.0
    %550 = vmatpush1.msra.mxu0 0.0
    %551 = vmatprep.subr.mxu0 0.0
    %552 = vmatpush1.msra.mxu0 0.0
    %553 = vmatprep.subr.mxu0 0.0
    %554 = vmatpush1.msra.mxu0 0.0
    %555 = vmatprep.subr.mxu0 0.0
    %556 = vmatpush1.msra.mxu0 0.0
    %557 = vmatprep.subr.mxu0 %v518
    %558 = vmatpush1.msra.mxu0 %v517
    %559 = vmatprep.subr.mxu0 %v516
    %560 = vmatpush1.msra.mxu0 %v515
    %561 = vmatprep.subr.mxu0 %v514
    %562 = vmatpush1.msra.mxu0 %v513
    %563 = vmatprep.subr.mxu0 %v512
    %564 = vmatpush1.msra.mxu0 %v511
    %565 = vmatprep.subr.mxu0 0.0
    %566 = vmatpush2.msra.mxu0 0.0
    %567 = vmatprep.subr.mxu0 0.0
    %568 = vmatpush2.msra.mxu0 0.0
    %569 = vmatprep.subr.mxu0 0.0
    %570 = vmatpush2.msra.mxu0 0.0
    %571 = vmatprep.subr.mxu0 0.0
    %572 = vmatpush2.msra.mxu0 0.0
    %573 = vmatprep.subr.mxu0 0.0
    %574 = vmatpush2.msra.mxu0 0.0
    %575 = vmatprep.subr.mxu0 0.0
    %576 = vmatpush2.msra.mxu0 0.0
    %577 = vmatprep.subr.mxu0 0.0
    %578 = vmatpush2.msra.mxu0 0.0
    %579 = vmatprep.subr.mxu0 0.0
    %580 = vmatpush2.msra.mxu0 0.0
    %581 = vmatprep.subr.mxu0 0.0
    %582 = vmatpush2.msra.mxu0 0.0
    %583 = vmatprep.subr.mxu0 0.0
    %584 = vmatpush2.msra.mxu0 0.0
    %585 = vmatprep.subr.mxu0 0.0
    %586 = vmatpush2.msra.mxu0 0.0
    %587 = vmatprep.subr.mxu0 0.0
    %588 = vmatpush2.msra.mxu0 0.0
    %589 = vmatprep.subr.mxu0 0.0
    %590 = vmatpush2.msra.mxu0 0.0
    %591 = vmatprep.subr.mxu0 0.0
    %592 = vmatpush2.msra.mxu0 0.0
    %593 = vmatprep.subr.mxu0 0.0
    %594 = vmatpush2.msra.mxu0 0.0
    %595 = vmatprep.subr.mxu0 0.0
    %596 = vmatpush2.msra.mxu0 0.0
    %597 = vmatprep.mubr.f32.mxu0 0.0
    %598 = vmatmul.mubr.f32.gmra.mxu0 %v531
    %v599 = vpop.f32.mrf.mxu0
    %v600 = vadd.f32 %v529, %v599
    %v601 = vpop.f32.mrf.mxu0
    %v602 = vadd.f32 %v529, %v601
    %603 = vdwg.mxu0
    %v604 = vxor.u32 %v600, 2147483648
    %v605 = vxor.u32 %v602, 2147483648
    %v606 = vmul.f32 %v604, 1.442695
    %v607 = vpow.pop %v606
    %v608 = vmul.f32 %v605, 1.442695
    %v609 = vpow.pop %v608
    %v610 = vadd.f32 %v607, 1.0
    %v611 = vadd.f32 %v609, 1.0
    %v612 = vrcp.pop %v610
    %v613 = vmul.f32 1.0, %v612
    %v614 = vrcp.pop %v611
    %v615 = vmul.f32 1.0, %v614
    %v618 = vcombine.low %v613, %v615
    %v620 = vunpack.c.l.s4 1966171168
    %v621 = vunpack.c.0.s8 %v620
    %v622 = vlaneseq
    %v623 = vshrl.u32 %v622, 7
    %v624 = vsub.s32 %v621, %v623
    %v625 = vrot.slane %v618, %v624
    %v627 = vunpack.c.l.s4 1966171168
    %v628 = vunpack.c.0.s8 %v627
    %v629 = vlaneseq
    %v630 = vshrl.u32 %v629, 7
    %v631 = vsub.s32 %v628, %v630
    %v632 = vrot.slane %v625, %v631
    %v634 = vlaneseq
    %vm635 = vcmp.ge.s32.totalorder %v634, 0
    %vm636 = vcmp.lt.s32.totalorder %v634, 256
    %vm637 = vmand %vm635, %vm636
    %638 = vst.msk [vmem:[#allocation8] sm:$0x3] %vm637, %v632
    // Predicated region
    $region38: #{tpu_custom_call.1} parent=1 // pred_check
      _
    $region39: #{tpu_custom_call.1} parent=1 // pred_check_branch
      %640 = sbr.rel (0) target = $region41
    $region40: #{tpu_custom_call.1} parent=1 // pred_region
      %s642 = ssub.s32 32, 32
      %643 = vsyncadd [#allocation5], %s642
      %s645 = sshll.u32 [#allocation8], 4
      %s646 = int_to_ptr.vmem [resolvable:$true] %s645
      %648 = dma.vmem_to_hbm [thread:$0]  %s646, 32, %s7, [#allocation5]
    $region41: #{tpu_custom_call.1} parent=1 // pred_fallthru
      _
    // Predicated region
    $region42: #{tpu_custom_call.1} parent=1 // pred_check
      _
    $region43: #{tpu_custom_call.1} parent=1 // pred_check_branch
      %650 = sbr.rel (0) target = $region45
    $region44: #{tpu_custom_call.1} parent=1 // pred_region
      %651 = dma.done [#allocation5], 32
    $region45: #{tpu_custom_call.1} parent=1 // pred_fallthru
      _
    %652 = vsyncpa [#allocation4], 1
    %653 = vsyncpa [#allocation7], 1
    %654 = vsyncpa [#allocation5], 1

</llo_original>
